<compile_context>
chip_gen: v5e
topology: v5e:2x2
jax: 0.10.0
libtpu: 0.0.40
codegen_flags: <defaults>
</compile_context>

<pallas_src>
import jax
import jax.numpy as jnp
from jax.experimental import pallas as pl
from jax.experimental.pallas import tpu as pltpu


def _embedding_gather_kernel(idx_ref, tbl_t_ref, out_ref):
    """VPU embedding gather via an unrolled compare/select chain.

    idx_ref:   (1, N) int32   -- lookup ids, lane-major
    tbl_t_ref: (D, V) float32 -- embedding table, pre-transposed (lanes = V)
    out_ref:   (D, N) float32 -- gathered embeddings, lane-major in N
    """
    idx = idx_ref[...]                       # (1, N) int32, single vreg
    tbl_t = tbl_t_ref[...]                   # (D, V) float32
    v_total = tbl_t_ref.shape[1]

    # Out-of-range ids (should never happen: ids in [0, 3)) fall through to
    # zeros, matching the one-hot-matmul behaviour of a reference gather.
    acc = jnp.zeros(out_ref.shape, dtype=jnp.float32)
    for v in range(v_total):                 # static, fully unrolled (V=8)
        col = tbl_t[:, v:v + 1]              # (D, 1) static lane slice
        # (1,N) cond  x  (D,1) val  ->  (D,N); at most one id matches per lane.
        acc = jnp.where(idx == v, col, acc)
    out_ref[...] = acc.astype(out_ref.dtype)


def dyn_embedding_forward(x, table):
    """x: (B, S) integer ids; table: (V, D) float32.  Returns (B, S, D)."""
    b, s = x.shape
    v, d = table.shape
    n = b * s

    idx = x.reshape(1, n).astype(jnp.int32)  # lane-major ids
    table_t = table.T                        # (D, V): layout plumbing in XLA

    # TODO(synk): if the dynamic table grows large (v7x: 64 MiB VMEM), keep it
    # in HBM (memory_space=pl.ANY) and DMA-gather rows; if N grows into the
    # thousands, tile N with a "parallel" grid axis instead of one block.
    out = pl.pallas_call(
        _embedding_gather_kernel,
        out_shape=jax.ShapeDtypeStruct((d, n), table.dtype),
        in_specs=[
            pl.BlockSpec(memory_space=pltpu.MemorySpace.VMEM),   # ids
            pl.BlockSpec(memory_space=pltpu.MemorySpace.VMEM),   # table^T
        ],
        out_specs=pl.BlockSpec(memory_space=pltpu.MemorySpace.VMEM),
    )(idx, table_t)

    # (D, N) -> (N, D) -> (B, S, D): pure layout plumbing outside the kernel.
    return out.T.reshape(b, s, d)


class SubModelPallas:
    """JAX/Pallas counterpart of SubModel: forward(x) -> emb(x)."""

    def __init__(self, key):
        k_opt, k_emb, k_lin_w, k_lin_b = jax.random.split(key, 4)

        # SGD([Parameter(torch.rand(3))], 0.1)  -- unused in forward.
        self.opt_param = jax.random.uniform(k_opt, (3,), dtype=jnp.float32)

        # DynEmbedding(3, opt, 2): embedding_dim = 2, initial 3 ids.
        # Table padded to 8 rows (extra rows never indexed).
        self.num_ids = 3
        self.embed_dim = 2
        v_padded = 8
        self.emb_table = jax.random.normal(
            k_emb, (v_padded, self.embed_dim), dtype=jnp.float32)

        # nn.Linear(2, 2) -- declared in __init__ but not used in forward.
        self.linear_w = jax.random.normal(k_lin_w, (2, 2), dtype=jnp.float32)
        self.linear_b = jax.random.normal(k_lin_b, (2,), dtype=jnp.float32)

    def forward(self, x):
        return dyn_embedding_forward(x, self.emb_table)


if __name__ == "__main__":
    key = jax.random.PRNGKey(0)
    k_model, k_ids = jax.random.split(key)

    model = SubModelPallas(k_model)

    # Small input: batch=2, seq=8, ids in [0, 3) (matching the 3-id embedding).
    B, S = 2, 8
    x = jax.random.randint(k_ids, (B, S), minval=0, maxval=model.num_ids,
                           dtype=jnp.int32)

    out = model.forward(x)
    out = jax.block_until_ready(out)

    # Cross-check against a plain-JAX gather reference.
    ref = model.emb_table[x]
    assert out.shape == (B, S, model.embed_dim), out.shape
    assert jnp.allclose(out, ref, atol=1e-6), "mismatch vs reference gather"

    print("KERNEL_OK")
</pallas_src>

<mosaic_0001>
module attributes {stable_mosaic.version = 11 : i64} {
  func.func @_embedding_gather_kernel(%arg0: memref<1x16xi32, #tpu.memory_space<vmem>>, %arg1: memref<2x8xf32, #tpu.memory_space<vmem>>, %arg2: memref<2x16xf32, #tpu.memory_space<vmem>>) attributes {dimension_semantics = [], scalar_prefetch = 0 : i64, scratch_operands = 0 : i64, tpu.core_type = #tpu.core_type<tc>} {
    %c0 = arith.constant 0 : index
    %c0_0 = arith.constant 0 : index
    %0 = vector.load %arg0[%c0, %c0_0] : memref<1x16xi32, #tpu.memory_space<vmem>>, vector<1x16xi32>
    %c0_1 = arith.constant 0 : index
    %c0_2 = arith.constant 0 : index
    %1 = vector.load %arg1[%c0_1, %c0_2] : memref<2x8xf32, #tpu.memory_space<vmem>>, vector<2x8xf32>
    %cst = arith.constant 0.000000e+00 : f32
    %2 = vector.broadcast %cst : f32 to vector<2x16xf32>
    %3 = vector.extract_strided_slice %1 {offsets = [0, 0], sizes = [2, 1], strides = [1, 1]} : vector<2x8xf32> to vector<2x1xf32>
    %c0_i32 = arith.constant 0 : i32
    %4 = vector.broadcast %c0_i32 : i32 to vector<1x16xi32>
    %5 = arith.cmpi eq, %0, %4 : vector<1x16xi32>
    %6 = vector.shape_cast %5 : vector<1x16xi1> to vector<1x16xi1>
    %7 = vector.broadcast %6 : vector<1x16xi1> to vector<2x16xi1>
    %8 = vector.shape_cast %3 : vector<2x1xf32> to vector<2x1xf32>
    %9 = vector.broadcast %8 : vector<2x1xf32> to vector<2x16xf32>
    %10 = arith.select %7, %9, %2 : vector<2x16xi1>, vector<2x16xf32>
    %11 = vector.extract_strided_slice %1 {offsets = [0, 1], sizes = [2, 1], strides = [1, 1]} : vector<2x8xf32> to vector<2x1xf32>
    %c1_i32 = arith.constant 1 : i32
    %12 = vector.broadcast %c1_i32 : i32 to vector<1x16xi32>
    %13 = arith.cmpi eq, %0, %12 : vector<1x16xi32>
    %14 = vector.shape_cast %13 : vector<1x16xi1> to vector<1x16xi1>
    %15 = vector.broadcast %14 : vector<1x16xi1> to vector<2x16xi1>
    %16 = vector.shape_cast %11 : vector<2x1xf32> to vector<2x1xf32>
    %17 = vector.broadcast %16 : vector<2x1xf32> to vector<2x16xf32>
    %18 = arith.select %15, %17, %10 : vector<2x16xi1>, vector<2x16xf32>
    %19 = vector.extract_strided_slice %1 {offsets = [0, 2], sizes = [2, 1], strides = [1, 1]} : vector<2x8xf32> to vector<2x1xf32>
    %c2_i32 = arith.constant 2 : i32
    %20 = vector.broadcast %c2_i32 : i32 to vector<1x16xi32>
    %21 = arith.cmpi eq, %0, %20 : vector<1x16xi32>
    %22 = vector.shape_cast %21 : vector<1x16xi1> to vector<1x16xi1>
    %23 = vector.broadcast %22 : vector<1x16xi1> to vector<2x16xi1>
    %24 = vector.shape_cast %19 : vector<2x1xf32> to vector<2x1xf32>
    %25 = vector.broadcast %24 : vector<2x1xf32> to vector<2x16xf32>
    %26 = arith.select %23, %25, %18 : vector<2x16xi1>, vector<2x16xf32>
    %27 = vector.extract_strided_slice %1 {offsets = [0, 3], sizes = [2, 1], strides = [1, 1]} : vector<2x8xf32> to vector<2x1xf32>
    %c3_i32 = arith.constant 3 : i32
    %28 = vector.broadcast %c3_i32 : i32 to vector<1x16xi32>
    %29 = arith.cmpi eq, %0, %28 : vector<1x16xi32>
    %30 = vector.shape_cast %29 : vector<1x16xi1> to vector<1x16xi1>
    %31 = vector.broadcast %30 : vector<1x16xi1> to vector<2x16xi1>
    %32 = vector.shape_cast %27 : vector<2x1xf32> to vector<2x1xf32>
    %33 = vector.broadcast %32 : vector<2x1xf32> to vector<2x16xf32>
    %34 = arith.select %31, %33, %26 : vector<2x16xi1>, vector<2x16xf32>
    %35 = vector.extract_strided_slice %1 {offsets = [0, 4], sizes = [2, 1], strides = [1, 1]} : vector<2x8xf32> to vector<2x1xf32>
    %c4_i32 = arith.constant 4 : i32
    %36 = vector.broadcast %c4_i32 : i32 to vector<1x16xi32>
    %37 = arith.cmpi eq, %0, %36 : vector<1x16xi32>
    %38 = vector.shape_cast %37 : vector<1x16xi1> to vector<1x16xi1>
    %39 = vector.broadcast %38 : vector<1x16xi1> to vector<2x16xi1>
    %40 = vector.shape_cast %35 : vector<2x1xf32> to vector<2x1xf32>
    %41 = vector.broadcast %40 : vector<2x1xf32> to vector<2x16xf32>
    %42 = arith.select %39, %41, %34 : vector<2x16xi1>, vector<2x16xf32>
    %43 = vector.extract_strided_slice %1 {offsets = [0, 5], sizes = [2, 1], strides = [1, 1]} : vector<2x8xf32> to vector<2x1xf32>
    %c5_i32 = arith.constant 5 : i32
    %44 = vector.broadcast %c5_i32 : i32 to vector<1x16xi32>
    %45 = arith.cmpi eq, %0, %44 : vector<1x16xi32>
    %46 = vector.shape_cast %45 : vector<1x16xi1> to vector<1x16xi1>
    %47 = vector.broadcast %46 : vector<1x16xi1> to vector<2x16xi1>
    %48 = vector.shape_cast %43 : vector<2x1xf32> to vector<2x1xf32>
    %49 = vector.broadcast %48 : vector<2x1xf32> to vector<2x16xf32>
    %50 = arith.select %47, %49, %42 : vector<2x16xi1>, vector<2x16xf32>
    %51 = vector.extract_strided_slice %1 {offsets = [0, 6], sizes = [2, 1], strides = [1, 1]} : vector<2x8xf32> to vector<2x1xf32>
    %c6_i32 = arith.constant 6 : i32
    %52 = vector.broadcast %c6_i32 : i32 to vector<1x16xi32>
    %53 = arith.cmpi eq, %0, %52 : vector<1x16xi32>
    %54 = vector.shape_cast %53 : vector<1x16xi1> to vector<1x16xi1>
    %55 = vector.broadcast %54 : vector<1x16xi1> to vector<2x16xi1>
    %56 = vector.shape_cast %51 : vector<2x1xf32> to vector<2x1xf32>
    %57 = vector.broadcast %56 : vector<2x1xf32> to vector<2x16xf32>
    %58 = arith.select %55, %57, %50 : vector<2x16xi1>, vector<2x16xf32>
    %59 = vector.extract_strided_slice %1 {offsets = [0, 7], sizes = [2, 1], strides = [1, 1]} : vector<2x8xf32> to vector<2x1xf32>
    %c7_i32 = arith.constant 7 : i32
    %60 = vector.broadcast %c7_i32 : i32 to vector<1x16xi32>
    %61 = arith.cmpi eq, %0, %60 : vector<1x16xi32>
    %62 = vector.shape_cast %61 : vector<1x16xi1> to vector<1x16xi1>
    %63 = vector.broadcast %62 : vector<1x16xi1> to vector<2x16xi1>
    %64 = vector.shape_cast %59 : vector<2x1xf32> to vector<2x1xf32>
    %65 = vector.broadcast %64 : vector<2x1xf32> to vector<2x16xf32>
    %66 = arith.select %63, %65, %58 : vector<2x16xi1>, vector<2x16xf32>
    %c0_3 = arith.constant 0 : index
    %c0_4 = arith.constant 0 : index
    %67 = vector.load %arg2[%c0_3, %c0_4] : memref<2x16xf32, #tpu.memory_space<vmem>>, vector<2x16xf32>
    tpu.vector_store %arg2[%c0_3, %c0_4], %66 {strides = array<i32>} : memref<2x16xf32, #tpu.memory_space<vmem>>, vector<2x16xf32>,
    return
  }
}

</mosaic_0001>

<llo_original>
// kernel: tpu_custom_call.1
$region0: #{tpu_custom_call.1}
  #allocation0 [shape = 'u32[]', space=smem, size = 0x4, offset = 0x4, fixed_abs, tag = 'smem constant byte address 0x4 - core index']
  #allocation1 [shape = 'u32[72,128]{1,0:T(1,128)}', space=vmem, size = 0x9000, scoped, tag = 'internal scratch']
  %s0 = inlined_call_operand.hbm [shape: s32[1,16], index: 0, kind: input, shape index: {}]
  %s1 = inlined_call_operand.hbm [shape: f32[2,8], index: 1, kind: input, shape index: {}]
  %s2 = inlined_call_operand.hbm [shape: f32[2,16], index: 2, kind: output, shape index: {}]
  %s3 = sld [smem:[#allocation0]]
  $region26: #{tpu_custom_call.1} parent=0
    _
  %s5 = ssub.s32 1, %s3
  %s6 = scalar_select 0, %s5, %s3
  $region1: #{tpu_custom_call.1} parent=0
    #allocation2 [shape = 'u8[512]{0}', space=vmem, size = 0x400, scoped, tag = 'input window, operand 0, single buffered']
    #allocation3 [shape = 's32[1]{0}', space=sflag, size = 0x4, scoped, tag = 'scoped memory for tpu_custom_call.1']
    #allocation4 [shape = 's32[1]{0}', space=sflag, size = 0x4, scoped, tag = 'scoped memory for tpu_custom_call.1']
    #allocation5 [shape = 'u8[1024]{0}', space=vmem, size = 0x400, scoped, tag = 'input window, operand 1, single buffered']
    #allocation6 [shape = 's32[1]{0}', space=sflag, size = 0x4, scoped, tag = 'scoped memory for tpu_custom_call.1']
    #allocation7 [shape = 'u8[1024]{0}', space=vmem, size = 0x400, scoped, tag = 'output window, operand 0, single buffered']
    %7 = vsyncpa [#allocation3], 0
    %8 = vsyncpa [#allocation6], 0
    %9 = vsyncpa [#allocation4], 0
    // Predicated region
    $region2: #{tpu_custom_call.1} parent=1 // pred_check
      _
    $region3: #{tpu_custom_call.1} parent=1 // pred_check_branch
      %11 = sbr.rel (0) target = $region5
    $region4: #{tpu_custom_call.1} parent=1 // pred_region
      %13 = vsyncadd [#allocation3], 0
      %s15 = sshll.u32 %s0, 4
      %s16 = int_to_ptr.hbm [resolvable:$true] %s15
      %s17 = sshll.u32 [#allocation2], 4
      %s18 = int_to_ptr.vmem [resolvable:$true] %s17
      %20 = dma.hbm_to_vmem [thread:$0]  %s16, 16, %s18, [#allocation3]
    $region5: #{tpu_custom_call.1} parent=1 // pred_fallthru
      _
    // Predicated region
    $region6: #{tpu_custom_call.1} parent=1 // pred_check
      _
    $region7: #{tpu_custom_call.1} parent=1 // pred_check_branch
      %22 = sbr.rel (0) target = $region9
    $region8: #{tpu_custom_call.1} parent=1 // pred_region
      %24 = vsyncadd [#allocation6], 0
      %s26 = sshll.u32 %s1, 4
      %s27 = int_to_ptr.hbm [resolvable:$true] %s26
      %s28 = sshll.u32 [#allocation5], 4
      %s29 = int_to_ptr.vmem [resolvable:$true] %s28
      %31 = dma.hbm_to_vmem [thread:$0]  %s27, 32, %s29, [#allocation6]
    $region9: #{tpu_custom_call.1} parent=1 // pred_fallthru
      _
    // Predicated region
    $region10: #{tpu_custom_call.1} parent=1 // pred_check
      _
    $region11: #{tpu_custom_call.1} parent=1 // pred_check_branch
      %33 = sbr.rel (0) target = $region13
    $region12: #{tpu_custom_call.1} parent=1 // pred_region
      %35 = dma.done [#allocation3], 16
    $region13: #{tpu_custom_call.1} parent=1 // pred_fallthru
      _
    // Predicated region
    $region14: #{tpu_custom_call.1} parent=1 // pred_check
      _
    $region15: #{tpu_custom_call.1} parent=1 // pred_check_branch
      %37 = sbr.rel (0) target = $region17
    $region16: #{tpu_custom_call.1} parent=1 // pred_region
      %39 = dma.done [#allocation6], 32
    $region17: #{tpu_custom_call.1} parent=1 // pred_fallthru
      _
    %v40 = vld [vmem:[#allocation2] sm:$0x1]
    %v41 = vld [vmem:[#allocation5] sm:$0x3]
    %vm42 = vcmp.eq.s32.totalorder %v40, 0
    %v43 = vsel %vm42, 1, 0
    %v44 = vperm.slane %v43, 0
    %vm45 = vcmp.eq.s32.totalorder %v44, 1
    %47 = vset.pattern.permute.xlu0 0
    %48 = vperm.xlu0 %47, %v41
    %v49 = vpop.permute.xlu0 %48
    %v51 = vsel %vm45, %v49, 0.0
    %vm52 = vcmp.eq.s32.totalorder %v40, 1
    %v53 = vsel %vm52, 1, 0
    %v54 = vperm.slane %v53, 0
    %vm55 = vcmp.eq.s32.totalorder %v54, 1
    %56 = vset.pattern.permute.xlu0 1
    %57 = vperm.xlu0 %56, %v41
    %v58 = vpop.permute.xlu0 %57
    %v60 = vsel %vm55, %v58, %v51
    %vm61 = vcmp.eq.s32.totalorder %v40, 2
    %v62 = vsel %vm61, 1, 0
    %v63 = vperm.slane %v62, 0
    %vm64 = vcmp.eq.s32.totalorder %v63, 1
    %65 = vset.pattern.permute.xlu0 2
    %66 = vperm.xlu0 %65, %v41
    %v67 = vpop.permute.xlu0 %66
    %v69 = vsel %vm64, %v67, %v60
    %vm70 = vcmp.eq.s32.totalorder %v40, 3
    %v71 = vsel %vm70, 1, 0
    %v72 = vperm.slane %v71, 0
    %vm73 = vcmp.eq.s32.totalorder %v72, 1
    %74 = vset.pattern.permute.xlu0 3
    %75 = vperm.xlu0 %74, %v41
    %v76 = vpop.permute.xlu0 %75
    %v78 = vsel %vm73, %v76, %v69
    %vm79 = vcmp.eq.s32.totalorder %v40, 4
    %v80 = vsel %vm79, 1, 0
    %v81 = vperm.slane %v80, 0
    %vm82 = vcmp.eq.s32.totalorder %v81, 1
    %83 = vset.pattern.permute.xlu0 4
    %84 = vperm.xlu0 %83, %v41
    %v85 = vpop.permute.xlu0 %84
    %v87 = vsel %vm82, %v85, %v78
    %vm88 = vcmp.eq.s32.totalorder %v40, 5
    %v89 = vsel %vm88, 1, 0
    %v90 = vperm.slane %v89, 0
    %vm91 = vcmp.eq.s32.totalorder %v90, 1
    %92 = vset.pattern.permute.xlu0 5
    %93 = vperm.xlu0 %92, %v41
    %v94 = vpop.permute.xlu0 %93
    %v96 = vsel %vm91, %v94, %v87
    %vm97 = vcmp.eq.s32.totalorder %v40, 6
    %v98 = vsel %vm97, 1, 0
    %v99 = vperm.slane %v98, 0
    %vm100 = vcmp.eq.s32.totalorder %v99, 1
    %101 = vset.pattern.permute.xlu0 6
    %102 = vperm.xlu0 %101, %v41
    %v103 = vpop.permute.xlu0 %102
    %v105 = vsel %vm100, %v103, %v96
    %vm106 = vcmp.eq.s32.totalorder %v40, 7
    %v107 = vsel %vm106, 1, 0
    %v108 = vperm.slane %v107, 0
    %vm109 = vcmp.eq.s32.totalorder %v108, 1
    %110 = vset.pattern.permute.xlu0 7
    %111 = vperm.xlu0 %110, %v41
    %v112 = vpop.permute.xlu0 %111
    %v114 = vsel %vm109, %v112, %v105
    %vm115 = vcmask 123904
    %116 = vst.msk [vmem:[#allocation7] sm:$0x3] %vm115, %v114
    // Predicated region
    $region18: #{tpu_custom_call.1} parent=1 // pred_check
      _
    $region19: #{tpu_custom_call.1} parent=1 // pred_check_branch
      %118 = sbr.rel (0) target = $region21
    $region20: #{tpu_custom_call.1} parent=1 // pred_region
      %120 = vsyncadd [#allocation4], 0
      %s122 = sshll.u32 [#allocation7], 4
      %s123 = int_to_ptr.vmem [resolvable:$true] %s122
      %s124 = sshll.u32 %s2, 4
      %s125 = int_to_ptr.hbm [resolvable:$true] %s124
      %127 = dma.vmem_to_hbm [thread:$0]  %s123, 32, %s125, [#allocation4]
    $region21: #{tpu_custom_call.1} parent=1 // pred_fallthru
      _
    // Predicated region
    $region22: #{tpu_custom_call.1} parent=1 // pred_check
      _
    $region23: #{tpu_custom_call.1} parent=1 // pred_check_branch
      %129 = sbr.rel (0) target = $region25
    $region24: #{tpu_custom_call.1} parent=1 // pred_region
      %131 = dma.done [#allocation4], 32
    $region25: #{tpu_custom_call.1} parent=1 // pred_fallthru
      _
    %132 = vsyncpa [#allocation3], 1
    %133 = vsyncpa [#allocation6], 1
    %134 = vsyncpa [#allocation4], 1

</llo_original>
